<compile_context>
chip_gen: v7x
topology: tpu7x:2x2x1
jax: 0.10.0
libtpu: 0.0.40
codegen_flags: <defaults>
</compile_context>

<pallas_src>
import jax
import jax.numpy as jnp
from jax.experimental import pallas as pl
from jax.experimental.pallas import tpu as pltpu

PAD = 0
START_DECODING_NO = 1
EOS = 2

LANE = 128
SUBLANE = 8

BATCH_TILE = 128        # MXU-filling batch tile for the recurrent kernels
TIME_CHUNK = 8          # time steps per grid step (bounds VMEM and unroll factor)
MATMUL_DTYPE = jnp.bfloat16


def _round_up(x, m):
    return (x + m - 1) // m * m


def _pick_tile(n, candidates):
    for c in candidates:
        if n >= c and n % c == 0:
            return c
    return n


# ---------------------------------------------------------------------------
# Kernel 1: batched projection  y = x @ w + b, tiled over rows AND output features.
# Used for the hoisted GRU input projections (all timesteps at once) and for the
# decoder vocabulary projection over the whole hidden sequence.
# ---------------------------------------------------------------------------
def projection_kernel(x_ref, w_ref, b_ref, o_ref):
    x = x_ref[...].astype(MATMUL_DTYPE)
    w = w_ref[...]                                   # pre-cast bf16 weights
    y = jnp.dot(x, w, preferred_element_type=jnp.float32) + b_ref[...]
    o_ref[...] = y.astype(o_ref.dtype)


def run_projection(x2d, w, b, out_dtype=jnp.float32):
    m, k = x2d.shape
    n = w.shape[1]
    tm = _pick_tile(m, (512, 256, 128, 64, 32, 16, 8))
    tn = _pick_tile(n, (512, 256, 128))
    return pl.pallas_call(
        projection_kernel,
        out_shape=jax.ShapeDtypeStruct((m, n), out_dtype),
        grid_spec=pltpu.PrefetchScalarGridSpec(
            num_scalar_prefetch=0,
            grid=(m // tm, n // tn),
            in_specs=[
                pl.BlockSpec((tm, k), lambda i, j: (i, 0)),   # activations
                pl.BlockSpec((k, tn), lambda i, j: (0, j)),   # weight column tile
                pl.BlockSpec((1, tn), lambda i, j: (0, j)),   # bias column tile
            ],
            out_specs=pl.BlockSpec((tm, tn), lambda i, j: (i, j)),
        ),
        compiler_params=pltpu.CompilerParams(
            dimension_semantics=("parallel", "parallel")),
    )(x2d, w, b)


# ---------------------------------------------------------------------------
# Kernels 2/3: serial GRU recurrences.  Grid = (batch tiles "parallel",
# time chunks "arbitrary").  gi = x @ W_ih + b_ih is precomputed, so per-step
# work is h @ W_hh + gate elementwise.  Gate slices are lane-aligned (Hp % 128 == 0).
# ---------------------------------------------------------------------------
def _gru_gates(gi, gh, h, hp):
    r = jax.nn.sigmoid(gi[:, 0:hp] + gh[:, 0:hp])
    z = jax.nn.sigmoid(gi[:, hp:2 * hp] + gh[:, hp:2 * hp])
    n = jnp.tanh(gi[:, 2 * hp:3 * hp] + r * gh[:, 2 * hp:3 * hp])
    return (1.0 - z) * n + z * h


def encoder_recurrent_kernel(lens_ref, gi_ref, whh_ref, bhh_ref, hfin_ref):
    # lens_ref : (bt, Hp) int32 lengths, lane-dense broadcast
    # gi_ref   : (TIME_CHUNK, bt, 3Hp) bf16 precomputed input gates
    # hfin_ref : (bt, Hp) f32 — resident across the time-chunk axis, doubles as h carry.
    tc = pl.program_id(1)
    Tc = gi_ref.shape[0]
    hp = whh_ref.shape[0]

    @pl.when(tc == 0)
    def _():
        hfin_ref[...] = jnp.zeros_like(hfin_ref)

    lens = lens_ref[...]
    whh = whh_ref[...]                       # bf16
    bhh = bhh_ref[...]                       # f32
    t_base = tc * Tc

    def step(t, h):
        gi = gi_ref[t].astype(jnp.float32)
        gh = jnp.dot(h.astype(MATMUL_DTYPE), whh,
                     preferred_element_type=jnp.float32) + bhh
        h_new = _gru_gates(gi, gh, h, hp)
        # pack_padded_sequence semantics: freeze hidden once t >= length[b].
        return jnp.where(lens > t_base + t, h_new, h)

    hfin_ref[...] = jax.lax.fori_loop(0, Tc, step, hfin_ref[...], unroll=True)


def decoder_recurrent_kernel(gi_ref, h0_ref, whh_ref, bhh_ref, hs_ref, h_scr):
    tc = pl.program_id(1)
    Tc = gi_ref.shape[0]
    hp = whh_ref.shape[0]

    @pl.when(tc == 0)
    def _():
        h_scr[...] = h0_ref[...].astype(jnp.float32)

    whh = whh_ref[...]
    bhh = bhh_ref[...]

    def step(t, h):
        gi = gi_ref[t].astype(jnp.float32)
        gh = jnp.dot(h.astype(MATMUL_DTYPE), whh,
                     preferred_element_type=jnp.float32) + bhh
        h_new = _gru_gates(gi, gh, h, hp)
        hs_ref[t] = h_new.astype(hs_ref.dtype)     # emit hidden; logits computed in bulk
        return h_new

    h_scr[...] = jax.lax.fori_loop(0, Tc, step, h_scr[...], unroll=True)


def run_encoder_recurrence(gi_seq, lens_bcast, w_hh, b_hh, bt=BATCH_TILE):
    T, Bp, h3 = gi_seq.shape
    hp = h3 // 3
    return pl.pallas_call(
        encoder_recurrent_kernel,
        out_shape=jax.ShapeDtypeStruct((Bp, hp), jnp.float32),
        grid_spec=pltpu.PrefetchScalarGridSpec(
            num_scalar_prefetch=0,
            grid=(Bp // bt, T // TIME_CHUNK),
            in_specs=[
                pl.BlockSpec((bt, hp), lambda b, tc: (b, 0)),               # lengths
                pl.BlockSpec((TIME_CHUNK, bt, h3), lambda b, tc: (tc, b, 0)),  # gi chunk
                pl.BlockSpec((hp, h3), lambda b, tc: (0, 0)),               # W_hh
                pl.BlockSpec((1, h3), lambda b, tc: (0, 0)),                # b_hh
            ],
            out_specs=pl.BlockSpec((bt, hp), lambda b, tc: (b, 0)),
        ),
        compiler_params=pltpu.CompilerParams(
            dimension_semantics=("parallel", "arbitrary")),
    )(lens_bcast, gi_seq, w_hh, b_hh)


def run_decoder_recurrence(gi_seq, h0, w_hh, b_hh, bt=BATCH_TILE):
    T, Bp, h3 = gi_seq.shape
    hp = h3 // 3
    return pl.pallas_call(
        decoder_recurrent_kernel,
        out_shape=jax.ShapeDtypeStruct((T, Bp, hp), jnp.bfloat16),
        grid_spec=pltpu.PrefetchScalarGridSpec(
            num_scalar_prefetch=0,
            grid=(Bp // bt, T // TIME_CHUNK),
            in_specs=[
                pl.BlockSpec((TIME_CHUNK, bt, h3), lambda b, tc: (tc, b, 0)),  # gi chunk
                pl.BlockSpec((bt, hp), lambda b, tc: (b, 0)),               # encoder hidden
                pl.BlockSpec((hp, h3), lambda b, tc: (0, 0)),               # W_hh
                pl.BlockSpec((1, h3), lambda b, tc: (0, 0)),                # b_hh
            ],
            out_specs=pl.BlockSpec((TIME_CHUNK, bt, hp), lambda b, tc: (tc, b, 0)),
            scratch_shapes=[pltpu.VMEM((bt, hp), jnp.float32)],             # h carry
        ),
        compiler_params=pltpu.CompilerParams(
            dimension_semantics=("parallel", "arbitrary")),
    )(gi_seq, h0, w_hh, b_hh)


# ---------------------------------------------------------------------------
# Full forward (teacher forcing path of VanilaEncoderDecoder.forward).
# ---------------------------------------------------------------------------
def vanila_encoder_decoder_forward(pparams, batch_X, lengths_X, max_length, batch_Y,
                                   output_size):
    Tx, B = batch_X.shape
    Bp = _round_up(B, BATCH_TILE)
    Hp = pparams["enc_w_hh"].shape[0]
    Vp = pparams["dec_w_out"].shape[1]

    def pad_batch(x, value):
        return jnp.pad(x, ((0, 0), (0, Bp - B)), constant_values=value)

    batch_Xp = pad_batch(batch_X.astype(jnp.int32), PAD)
    batch_Yp = pad_batch(batch_Y.astype(jnp.int32), PAD)
    lens_p = jnp.pad(lengths_X.astype(jnp.int32), (0, Bp - B), constant_values=0)

    # --- Encoder -----------------------------------------------------------
    Txp = _round_up(Tx, TIME_CHUNK)
    # TODO(synk): fuse this embedding gather into the input projection kernel
    # (scalar-prefetched ids + data-dependent index_map) to cut one HBM round trip.
    enc_emb = jnp.take(pparams["enc_emb"], batch_Xp, axis=0)            # (Tx, Bp, Hp) bf16
    gi_enc = run_projection(enc_emb.reshape(Tx * Bp, Hp),
                            pparams["enc_w_ih"], pparams["enc_b_ih"],
                            out_dtype=jnp.bfloat16).reshape(Tx, Bp, 3 * Hp)
    gi_enc = jnp.pad(gi_enc, ((0, Txp - Tx), (0, 0), (0, 0)))
    lens_bcast = jnp.broadcast_to(lens_p[:, None], (Bp, Hp))            # lane-dense
    enc_hidden = run_encoder_recurrence(gi_enc, lens_bcast,
                                        pparams["enc_w_hh"], pparams["enc_b_hh"])

    # --- Decoder (teacher forcing): inputs = [BOS, batch_Y[:max_length-1]] --
    bos = jnp.full((1, Bp), START_DECODING_NO, dtype=jnp.int32)
    dec_in = jnp.concatenate([bos, batch_Yp[: max_length - 1]], axis=0)  # (Td, Bp)
    Td = dec_in.shape[0]
    Tdp = _round_up(Td, TIME_CHUNK)
    dec_emb = jnp.take(pparams["dec_emb"], dec_in, axis=0)               # (Td, Bp, Hp) bf16
    gi_dec = run_projection(dec_emb.reshape(Td * Bp, Hp),
                            pparams["dec_w_ih"], pparams["dec_b_ih"],
                            out_dtype=jnp.bfloat16).reshape(Td, Bp, 3 * Hp)
    gi_dec = jnp.pad(gi_dec, ((0, Tdp - Td), (0, 0), (0, 0)))
    hs = run_decoder_recurrence(gi_dec, enc_hidden,
                                pparams["dec_w_hh"], pparams["dec_b_hh"])  # (Tdp,Bp,Hp) bf16
    hs = hs[:Td]

    # Vocabulary projection over the whole hidden sequence (N-tiled, lane-dense).
    logits = run_projection(hs.reshape(Td * Bp, Hp),
                            pparams["dec_w_out"], pparams["dec_b_out"],
                            out_dtype=jnp.float32).reshape(Td, Bp, Vp)

    # TODO(synk): the non-teacher-forcing branch (argmax feedback + EOS early break on
    # sample 0) is data-dependent control flow and is not implemented here.
    return logits[:, :B, :output_size]


# ---------------------------------------------------------------------------
# Pure-JAX reference (unpadded, f32, for correctness check).
# ---------------------------------------------------------------------------
def _gru_cell_ref(x, h, w_ih, w_hh, b_ih, b_hh):
    H = h.shape[-1]
    gi = jnp.dot(x, w_ih, preferred_element_type=jnp.float32) + b_ih
    gh = jnp.dot(h, w_hh, preferred_element_type=jnp.float32) + b_hh
    r = jax.nn.sigmoid(gi[:, 0:H] + gh[:, 0:H])
    z = jax.nn.sigmoid(gi[:, H:2 * H] + gh[:, H:2 * H])
    n = jnp.tanh(gi[:, 2 * H:] + r * gh[:, 2 * H:])
    return (1.0 - z) * n + z * h


def reference_forward(params, batch_X, lengths_X, max_length, batch_Y):
    T, B = batch_X.shape
    H = params["enc_w_hh"].shape[0]

    enc_emb_seq = jnp.take(params["enc_emb"], batch_X, axis=0)

    def enc_step(h, inp):
        x, t = inp
        h_new = _gru_cell_ref(x, h, params["enc_w_ih"], params["enc_w_hh"],
                              params["enc_b_ih"], params["enc_b_hh"])
        mask = lengths_X.reshape(B, 1) > t
        return jnp.where(mask, h_new, h), None

    h_enc, _ = jax.lax.scan(enc_step, jnp.zeros((B, H), jnp.float32),
                            (enc_emb_seq, jnp.arange(T)))

    bos = jnp.full((1, B), START_DECODING_NO, dtype=jnp.int32)
    dec_in = jnp.concatenate([bos, batch_Y[: max_length - 1]], axis=0)
    dec_emb_seq = jnp.take(params["dec_emb"], dec_in, axis=0)

    def dec_step(h, x):
        h_new = _gru_cell_ref(x, h, params["dec_w_ih"], params["dec_w_hh"],
                              params["dec_b_ih"], params["dec_b_hh"])
        logits = h_new @ params["dec_w_out"] + params["dec_b_out"]
        return h_new, logits

    _, outs = jax.lax.scan(dec_step, h_enc, dec_emb_seq)
    return outs


# ---------------------------------------------------------------------------
# Parameter init (unpadded f32) + zero-padding to lane multiples and bf16 pre-cast
# of matmul operands for the Pallas path.
# ---------------------------------------------------------------------------
def init_params(key, input_size, output_size, hidden_size):
    ks = jax.random.split(key, 12)
    s = 1.0 / jnp.sqrt(hidden_size)

    def u(k, shape):
        return jax.random.uniform(k, shape, jnp.float32, -s, s)

    enc_emb = jax.random.normal(ks[0], (input_size, hidden_size), jnp.float32)
    enc_emb = enc_emb.at[PAD].set(0.0)                      # padding_idx=PAD
    dec_emb = jax.random.normal(ks[1], (output_size, hidden_size), jnp.float32)
    dec_emb = dec_emb.at[PAD].set(0.0)

    return {
        "enc_emb": enc_emb,
        "enc_w_ih": u(ks[2], (hidden_size, 3 * hidden_size)),
        "enc_w_hh": u(ks[3], (hidden_size, 3 * hidden_size)),
        "enc_b_ih": u(ks[4], (1, 3 * hidden_size)),
        "enc_b_hh": u(ks[5], (1, 3 * hidden_size)),
        "dec_emb": dec_emb,
        "dec_w_ih": u(ks[6], (hidden_size, 3 * hidden_size)),
        "dec_w_hh": u(ks[7], (hidden_size, 3 * hidden_size)),
        "dec_b_ih": u(ks[8], (1, 3 * hidden_size)),
        "dec_b_hh": u(ks[9], (1, 3 * hidden_size)),
        "dec_w_out": u(ks[10], (hidden_size, output_size)),
        "dec_b_out": u(ks[11], (1, output_size)),
    }


def _pad_to(x, shape):
    pads = [(0, s - d) for d, s in zip(x.shape, shape)]
    return jnp.pad(x, pads)


def _pad_gru_weight(w, H, Hp):
    # (H, 3H) -> (Hp, 3Hp): zero-pad each gate block so gate g occupies lanes
    # [g*Hp, (g+1)*Hp).  Zero pads keep padded hidden lanes exactly 0.
    gates = [_pad_to(w[:, g * H:(g + 1) * H], (Hp, Hp)) for g in range(3)]
    return jnp.concatenate(gates, axis=1)


def _pad_gru_bias(b, H, Hp):
    gates = [_pad_to(b[:, g * H:(g + 1) * H], (1, Hp)) for g in range(3)]
    return jnp.concatenate(gates, axis=1)


def pad_params(p, hidden_size, output_size):
    H, Hp = hidden_size, _round_up(hidden_size, LANE)
    V, Vp = output_size, _round_up(output_size, LANE)
    bf = jnp.bfloat16
    return {
        # matmul operands: padded + pre-cast to bf16 (MXU-native, half the DMA)
        "enc_emb": _pad_to(p["enc_emb"], (p["enc_emb"].shape[0], Hp)).astype(bf),
        "enc_w_ih": _pad_gru_weight(p["enc_w_ih"], H, Hp).astype(bf),
        "enc_w_hh": _pad_gru_weight(p["enc_w_hh"], H, Hp).astype(bf),
        "dec_emb": _pad_to(p["dec_emb"], (p["dec_emb"].shape[0], Hp)).astype(bf),
        "dec_w_ih": _pad_gru_weight(p["dec_w_ih"], H, Hp).astype(bf),
        "dec_w_hh": _pad_gru_weight(p["dec_w_hh"], H, Hp).astype(bf),
        "dec_w_out": _pad_to(p["dec_w_out"], (Hp, Vp)).astype(bf),
        # biases stay f32 (added after f32 accumulation)
        "enc_b_ih": _pad_gru_bias(p["enc_b_ih"], H, Hp),
        "enc_b_hh": _pad_gru_bias(p["enc_b_hh"], H, Hp),
        "dec_b_ih": _pad_gru_bias(p["dec_b_ih"], H, Hp),
        "dec_b_hh": _pad_gru_bias(p["dec_b_hh"], H, Hp),
        "dec_b_out": _pad_to(p["dec_b_out"], (1, Vp)),
    }


if __name__ == "__main__":
    input_size = 16    # source vocab
    output_size = 12   # target vocab
    hidden_size = 32
    batch_size = 4
    src_len = 8
    max_length = 6

    key = jax.random.PRNGKey(0)
    k_param, k_x, k_y = jax.random.split(key, 3)
    params = init_params(k_param, input_size, output_size, hidden_size)
    pparams = pad_params(params, hidden_size, output_size)

    # Source batch (T, B) with decreasing lengths (pack_padded_sequence convention),
    # padded positions set to PAD.
    lengths_X = jnp.array([8, 6, 5, 3], dtype=jnp.int32)
    batch_X = jax.random.randint(k_x, (src_len, batch_size), 3, input_size, dtype=jnp.int32)
    t_idx = jnp.arange(src_len)[:, None]
    batch_X = jnp.where(t_idx < lengths_X[None, :], batch_X, PAD)

    # Target batch for teacher forcing.
    batch_Y = jax.random.randint(k_y, (max_length, batch_size), 3, output_size,
                                 dtype=jnp.int32)

    out = vanila_encoder_decoder_forward(pparams, batch_X, lengths_X, max_length,
                                         batch_Y, output_size)
    out = jax.block_until_ready(out)
    assert out.shape == (max_length, batch_size, output_size)

    # Reference with bf16-rounded weights (the kernel path runs bf16 matmuls).
    qparams = dict(params)
    for name in ("enc_emb", "dec_emb", "enc_w_ih", "enc_w_hh",
                 "dec_w_ih", "dec_w_hh", "dec_w_out"):
        qparams[name] = params[name].astype(jnp.bfloat16).astype(jnp.float32)
    ref = reference_forward(qparams, batch_X, lengths_X, max_length, batch_Y)
    err = float(jnp.max(jnp.abs(out - ref)))
    assert err < 5e-2, err

    print("KERNEL_OK")
</pallas_src>

<mosaic_0001>
module attributes {stable_mosaic.version = 11 : i64} {
  func.func @projection_kernel(%arg0: i32, %arg1: i32, %arg2: memref<512x128xbf16, #tpu.memory_space<vmem>>, %arg3: memref<128x128xbf16, #tpu.memory_space<vmem>>, %arg4: memref<1x128xf32, #tpu.memory_space<vmem>>, %arg5: memref<512x128xbf16, #tpu.memory_space<vmem>>) attributes {dimension_semantics = [#tpu.dimension_semantics<parallel>, #tpu.dimension_semantics<parallel>], iteration_bounds = array<i64: 2, 3>, scalar_prefetch = 0 : i64, scratch_operands = 0 : i64, tpu.core_type = #tpu.core_type<tc>, window_params = [{transform_indices = @transform_0, window_bounds = array<i64: 512, 128>}, {transform_indices = @transform_1, window_bounds = array<i64: 128, 128>}, {transform_indices = @transform_2, window_bounds = array<i64: 1, 128>}, {transform_indices = @transform_3, window_bounds = array<i64: 512, 128>}]} {
    %c0 = arith.constant 0 : index
    %c0_0 = arith.constant 0 : index
    %0 = vector.load %arg2[%c0, %c0_0] : memref<512x128xbf16, #tpu.memory_space<vmem>>, vector<512x128xbf16>
    %c0_1 = arith.constant 0 : index
    %c0_2 = arith.constant 0 : index
    %1 = vector.load %arg3[%c0_1, %c0_2] : memref<128x128xbf16, #tpu.memory_space<vmem>>, vector<128x128xbf16>
    %cst = arith.constant dense<0.000000e+00> : vector<512x128xf32>
    %2 = tpu.matmul %0, %1, %cst {dimension_numbers = #tpu.dot_dimension_numbers<[1], [0], [0], [1], [0, 0, 1, 1], [], []>} : vector<512x128xbf16>, vector<128x128xbf16>, vector<512x128xf32> -> vector<512x128xf32>
    %c0_3 = arith.constant 0 : index
    %c0_4 = arith.constant 0 : index
    %3 = vector.load %arg4[%c0_3, %c0_4] : memref<1x128xf32, #tpu.memory_space<vmem>>, vector<1x128xf32>
    %4 = vector.broadcast %3 : vector<1x128xf32> to vector<512x128xf32>
    %5 = arith.addf %2, %4 : vector<512x128xf32>
    %6 = arith.truncf %5 : vector<512x128xf32> to vector<512x128xbf16>
    %c0_5 = arith.constant 0 : index
    %c0_6 = arith.constant 0 : index
    %7 = vector.load %arg5[%c0_5, %c0_6] : memref<512x128xbf16, #tpu.memory_space<vmem>>, vector<512x128xbf16>
    tpu.vector_store %arg5[%c0_5, %c0_6], %6 {strides = array<i32>} : memref<512x128xbf16, #tpu.memory_space<vmem>>, vector<512x128xbf16>,
    return
  }
  func.func @transform_0(%arg0: i32, %arg1: i32) -> (i32, i32) {
    %c0_i32 = arith.constant 0 : i32
    %c0_i32_0 = arith.constant 0 : i32
    return %arg0, %c0_i32 : i32, i32
  }
  func.func @transform_1(%arg0: i32, %arg1: i32) -> (i32, i32) {
    %c0_i32 = arith.constant 0 : i32
    %c0_i32_0 = arith.constant 0 : i32
    return %c0_i32, %arg1 : i32, i32
  }
  func.func @transform_2(%arg0: i32, %arg1: i32) -> (i32, i32) {
    %c0_i32 = arith.constant 0 : i32
    %c0_i32_0 = arith.constant 0 : i32
    return %c0_i32, %arg1 : i32, i32
  }
  func.func @transform_3(%arg0: i32, %arg1: i32) -> (i32, i32) {
    %c0_i32 = arith.constant 0 : i32
    return %arg0, %arg1 : i32, i32
  }
}

</mosaic_0001>

<llo_original>
// kernel: tpu_custom_call.1
$region0: #{tpu_custom_call.1}
  #allocation0 [shape = 'u32[]', space=smem, size = 0x4, offset = 0x4, fixed_abs, tag = 'smem constant byte address 0x4 - core index']
  #allocation1 [shape = 'u32[144,128]{1,0:T(1,128)}', space=vmem, size = 0x12000, scoped, tag = 'internal scratch']
  %s0 = inlined_call_operand.hbm [shape: bf16[1024,128], index: 0, kind: input, shape index: {}]
  %s1 = inlined_call_operand.hbm [shape: bf16[128,384], index: 1, kind: input, shape index: {}]
  %s2 = inlined_call_operand.vmem [shape: f32[1,384], index: 2, kind: input, shape index: {}]
  %s3 = inlined_call_operand.hbm [shape: bf16[1024,384], index: 3, kind: output, shape index: {}]
  %s4 = sld [smem:[#allocation0]]
  $region53: #{tpu_custom_call.1} parent=0
    _
  %s6 = ssub.s32 1, %s4
  %s7 = scalar_select 0, %s6, %s4
  $region1: #{tpu_custom_call.1} parent=0
    #allocation2 [shape = 'u8[262144]{0}', space=vmem, size = 0x40000, scoped, tag = 'input window, operand 0']
    #allocation3 [shape = 's32[2]{0}', space=sflag, size = 0x8, scoped, tag = 'scoped memory for tpu_custom_call.1']
    #allocation4 [shape = 's32[2]{0}', space=sflag, size = 0x8, scoped, tag = 'scoped memory for tpu_custom_call.1']
    #allocation5 [shape = 'u8[65536]{0}', space=vmem, size = 0x10000, scoped, tag = 'input window, operand 1']
    #allocation6 [shape = 's32[2]{0}', space=sflag, size = 0x8, scoped, tag = 'scoped memory for tpu_custom_call.1']
    #allocation7 [shape = 'u8[262144]{0}', space=vmem, size = 0x40000, scoped, tag = 'output window, operand 0']
    %8 = vsyncpa [#allocation3], 0
    %s9 = scalar_lea.sflag [#allocation3], 1
    %10 = vsyncpa %s9, 0
    %11 = vsyncpa [#allocation6], 0
    %s12 = scalar_lea.sflag [#allocation6], 1
    %13 = vsyncpa %s12, 0
    %14 = vsyncpa [#allocation4], 0
    %s15 = scalar_lea.sflag [#allocation4], 1
    %16 = vsyncpa %s15, 0
    loop: start=0, step=1, limit=8
    $region2: #{tpu_custom_call.1} parent=1 // loop_pre_header
      _
    $region3: #{tpu_custom_call.1} parent=1 // loop_header
      %s18 = sphi 0, %s22
      %p19 = scmp.ge.s32.totalorder %s18, 8
      %s25 = sphi 0, %s37
      %s26 = sphi 0, %s33
      %s27 = sphi 0, %s25
      %s28 = sphi 0, %s26
      %s29 = sphi 0, %s27
      %s30 = sphi 0, %s28
      %s40 = sphi 0, %s42
      %s43 = sphi 0, %s40
      %s44 = sphi 0, %s43
      %s60 = sphi 0, %s44
      %s66 = sphi 0, %s68
      %s69 = sphi 0, %s66
      %s70 = sphi 0, %s69
      %s86 = sphi 0, %s70
      %s92 = sphi 0, %s94
      %s95 = sphi 0, %s92
      %s96 = sphi 0, %s95
      %s112 = sphi 0, %s96
      %s120 = sphi 0, %s122
      %s123 = sphi 0, %s120
      %s124 = sphi 0, %s123
      %s140 = sphi 0, %s124
    $region4: #{tpu_custom_call.1} parent=1 // loop_header_branch
      %21 = sbr.rel (%p19) target = $region8
    $region5: #{tpu_custom_call.1} parent=1 // loop_body
      %s23 = ssub.s32 %s18, 1
      %s24 = ssub.s32 %s18, 2
      %s31 = sadd.s32 1, %s26
      %p32 = scmp.ge.s32.totalorder %s31, 3
      %s33 = scalar_select %p32, 0, %s31
      %s34 = sadd.s32 1, %s25
      %s35 = scalar_select %p32, %s34, %s25
      %p36 = scmp.ge.s32.totalorder %s35, 2
      %s37 = scalar_select %p36, 0, %s35
      %s38 = ssub.s32 %s25, %s37
      %p39 = scmp.eq.s32.totalorder %s38, 0
      %s41 = sadd.s32 %s40, 1
      %s42 = scalar_select %p39, %s40, %s41
      %p45 = pneg %p39
      %p46 = scmp.eq.s32.totalorder %s18, 5
      %p47 = por %p45, %p46
      %p48 = scmp.ne.s32.totalorder %s40, %s43
      %p49 = scmp.eq.s32.totalorder %s18, 0
      %p50 = por %p48, %p49
      %p51 = scmp.ne.s32.totalorder %s40, %s43
      %p52 = scmp.eq.s32.totalorder %s23, 5
      %p53 = por %p51, %p52
      %p54 = scmp.ne.s32.totalorder %s43, %s44
      %p55 = scmp.eq.s32.totalorder %s23, 0
      %p56 = por %p54, %p55
      %p57 = scmp.ne.s32.totalorder %s43, %s44
      %p58 = scmp.eq.s32.totalorder %s24, 5
      %p59 = por %p57, %p58
      %p61 = scmp.ne.s32.totalorder %s44, %s60
      %p62 = scmp.eq.s32.totalorder %s24, 0
      %p63 = por %p61, %p62
      %s64 = ssub.s32 %s26, %s33
      %p65 = scmp.eq.s32.totalorder %s64, 0
      %s67 = sadd.s32 %s66, 1
      %s68 = scalar_select %p65, %s66, %s67
      %p71 = pneg %p65
      %p72 = scmp.eq.s32.totalorder %s18, 5
      %p73 = por %p71, %p72
      %p74 = scmp.ne.s32.totalorder %s66, %s69
      %p75 = scmp.eq.s32.totalorder %s18, 0
      %p76 = por %p74, %p75
      %p77 = scmp.ne.s32.totalorder %s66, %s69
      %p78 = scmp.eq.s32.totalorder %s23, 5
      %p79 = por %p77, %p78
      %p80 = scmp.ne.s32.totalorder %s69, %s70
      %p81 = scmp.eq.s32.totalorder %s23, 0
      %p82 = por %p80, %p81
      %p83 = scmp.ne.s32.totalorder %s69, %s70
      %p84 = scmp.eq.s32.totalorder %s24, 5
      %p85 = por %p83, %p84
      %p87 = scmp.ne.s32.totalorder %s70, %s86
      %p88 = scmp.eq.s32.totalorder %s24, 0
      %p89 = por %p87, %p88
      %s90 = ssub.s32 %s26, %s33
      %p91 = scmp.eq.s32.totalorder %s90, 0
      %s93 = sadd.s32 %s92, 1
      %s94 = scalar_select %p91, %s92, %s93
      %p97 = pneg %p91
      %p98 = scmp.eq.s32.totalorder %s18, 5
      %p99 = por %p97, %p98
      %p100 = scmp.ne.s32.totalorder %s92, %s95
      %p101 = scmp.eq.s32.totalorder %s18, 0
      %p102 = por %p100, %p101
      %p103 = scmp.ne.s32.totalorder %s92, %s95
      %p104 = scmp.eq.s32.totalorder %s23, 5
      %p105 = por %p103, %p104
      %p106 = scmp.ne.s32.totalorder %s95, %s96
      %p107 = scmp.eq.s32.totalorder %s23, 0
      %p108 = por %p106, %p107
      %p109 = scmp.ne.s32.totalorder %s95, %s96
      %p110 = scmp.eq.s32.totalorder %s24, 5
      %p111 = por %p109, %p110
      %p113 = scmp.ne.s32.totalorder %s96, %s112
      %p114 = scmp.eq.s32.totalorder %s24, 0
      %p115 = por %p113, %p114
      %s116 = ssub.s32 %s25, %s37
      %s117 = ssub.s32 %s26, %s33
      %s118 = sor.u32 %s116, %s117
      %p119 = scmp.eq.s32.totalorder %s118, 0
      %s121 = sadd.s32 %s120, 1
      %s122 = scalar_select %p119, %s120, %s121
      %p125 = pneg %p119
      %p126 = scmp.eq.s32.totalorder %s18, 5
      %p127 = por %p125, %p126
      %p128 = scmp.ne.s32.totalorder %s120, %s123
      %p129 = scmp.eq.s32.totalorder %s18, 0
      %p130 = por %p128, %p129
      %p131 = scmp.ne.s32.totalorder %s120, %s123
      %p132 = scmp.eq.s32.totalorder %s23, 5
      %p133 = por %p131, %p132
      %p134 = scmp.ne.s32.totalorder %s123, %s124
      %p135 = scmp.eq.s32.totalorder %s23, 0
      %p136 = por %p134, %p135
      %p137 = scmp.ne.s32.totalorder %s123, %s124
      %p138 = scmp.eq.s32.totalorder %s24, 5
      %p139 = por %p137, %p138
      %p141 = scmp.ne.s32.totalorder %s124, %s140
      %p142 = scmp.eq.s32.totalorder %s24, 0
      %p143 = por %p141, %p142
      %p144 = scmp.le.s32.totalorder 1, %s18
      %p145 = scmp.lt.s32.totalorder %s18, 7
      %p146 = pnand %p144, %p145
      %p147 = pneg %p146
      // Predicated region
      $region9: #{tpu_custom_call.1} parent=5 // pred_check
        _
      $region10: #{tpu_custom_call.1} parent=5 // pred_check_branch
        %149 = sbr.rel (%p146) target = $region12
      $region11: #{tpu_custom_call.1} parent=5 // pred_region
        %s150 = ssub.s32 %s18, 1
      $region12: #{tpu_custom_call.1} parent=5 // pred_fallthru
        _
      %p151 = scmp.lt.s32.totalorder %s18, 6
      // Predicated region
      $region13: #{tpu_custom_call.1} parent=5 // pred_check
        %p152 = pneg %p151
      $region14: #{tpu_custom_call.1} parent=5 // pred_check_branch
        %154 = sbr.rel (%p152) target = $region16
      $region15: #{tpu_custom_call.1} parent=5 // pred_region
        // Predicated region
        $region17: #{tpu_custom_call.1} parent=15 // pred_check
          %p155 = pneg %p50
        $region18: #{tpu_custom_call.1} parent=15 // pred_check_branch
          %157 = sbr.rel (%p155) target = $region20
        $region19: #{tpu_custom_call.1} parent=15 // pred_region
          %s158 = sand.u32 %s40, 1
          %s159 = scalar_lea.sflag [#allocation3], %s158
          %s160 = sand.u32 %s40, 1
          %s161 = smul.addr %s160, 256
          %s162 = scalar_lea.vmem [#allocation2], %s161
          %s163 = smul.u32 64, %s25
          %s165 = ssub.s32 4096, 4096
          %166 = vsyncadd %s159, %s165
          %s167 = smul.addr %s163, 64
          %s168 = scalar_lea.hbm %s0, %s167
          %s169 = sshll.u32 %s162, 4
          %s170 = int_to_ptr.vmem [resolvable:$true] %s169
          %175 = dma.hbm_to_vmem [thread:$0]  %s168, 4096, %s170, %s159, 64, 64, 4
        $region20: #{tpu_custom_call.1} parent=15 // pred_fallthru
          _
        // Predicated region
        $region21: #{tpu_custom_call.1} parent=15 // pred_check
          %p176 = pneg %p76
        $region22: #{tpu_custom_call.1} parent=15 // pred_check_branch
          %178 = sbr.rel (%p176) target = $region24
        $region23: #{tpu_custom_call.1} parent=15 // pred_region
          %s179 = sand.u32 %s66, 1
          %s180 = scalar_lea.sflag [#allocation6], %s179
          %s181 = sand.u32 %s66, 1
          %s182 = smul.addr %s181, 64
          %s183 = scalar_lea.vmem [#allocation5], %s182
          %s185 = ssub.s32 1024, 1024
          %186 = vsyncadd %s180, %s185
          %s187 = smul.addr %s26, 64
          %s188 = scalar_lea.hbm %s1, %s187
          %s189 = sshll.u32 %s183, 4
          %s190 = int_to_ptr.vmem [resolvable:$true] %s189
          %195 = dma.hbm_to_vmem [thread:$0]  %s188, 1024, %s190, %s180, 192, 64, 4
        $region24: #{tpu_custom_call.1} parent=15 // pred_fallthru
          _
        // Predicated region
        $region25: #{tpu_custom_call.1} parent=15 // pred_check
          %p196 = pneg %p102
        $region26: #{tpu_custom_call.1} parent=15 // pred_check_branch
          %198 = sbr.rel (%p196) target = $region28
        $region27: #{tpu_custom_call.1} parent=15 // pred_region
          %p199 = scmp.lt.s32.totalorder %s26, 2
          %s200 = scalar_select %p199, %s26, 2
          %s201 = scalar_lea.vmem %s2, %s200
        $region28: #{tpu_custom_call.1} parent=15 // pred_fallthru
          _
      $region16: #{tpu_custom_call.1} parent=5 // pred_fallthru
        _
      %p202 = scmp.le.s32.totalorder 1, %s18
      %p203 = scmp.lt.s32.totalorder %s18, 7
      %p204 = pnand %p202, %p203
      %p205 = pneg %p204
      // Predicated region
      $region29: #{tpu_custom_call.1} parent=5 // pred_check
        _
      $region30: #{tpu_custom_call.1} parent=5 // pred_check_branch
        %207 = sbr.rel (%p204) target = $region32
      $region31: #{tpu_custom_call.1} parent=5 // pred_region
        %s208 = ssub.s32 %s18, 1
        %s209 = sand.u32 %s43, 1
        %s210 = scalar_lea.sflag [#allocation3], %s209
        %s211 = sand.u32 %s43, 1
        %s212 = smul.addr %s211, 256
        %s213 = scalar_lea.vmem [#allocation2], %s212
        // Predicated region
        $region33: #{tpu_custom_call.1} parent=31 // pred_check
          %p214 = pneg %p56
        $region34: #{tpu_custom_call.1} parent=31 // pred_check_branch
          %216 = sbr.rel (%p214) target = $region36
        $region35: #{tpu_custom_call.1} parent=31 // pred_region
          %217 = dma.done %s210, 4096
        $region36: #{tpu_custom_call.1} parent=31 // pred_fallthru
          _
        %s218 = sand.u32 %s69, 1
        %s219 = scalar_lea.sflag [#allocation6], %s218
        %s220 = sand.u32 %s69, 1
        %s221 = smul.addr %s220, 64
        %s222 = scalar_lea.vmem [#allocation5], %s221
        // Predicated region
        $region37: #{tpu_custom_call.1} parent=31 // pred_check
          %p223 = pneg %p82
        $region38: #{tpu_custom_call.1} parent=31 // pred_check_branch
          %225 = sbr.rel (%p223) target = $region40
        $region39: #{tpu_custom_call.1} parent=31 // pred_region
          %226 = dma.done %s219, 1024
        $region40: #{tpu_custom_call.1} parent=31 // pred_fallthru
          _
        %s227 = sand.u32 %s43, 1
        %s228 = scalar_lea.sflag [#allocation3], %s227
        %s229 = sand.u32 %s43, 1
        %s230 = smul.addr %s229, 256
        %s231 = scalar_lea.vmem [#allocation2], %s230
        %p232 = pneg %p56
        %p233 = pneg %p53
        %s234 = sand.u32 %s69, 1
        %s235 = scalar_lea.sflag [#allocation6], %s234
        %s236 = sand.u32 %s69, 1
        %s237 = smul.addr %s236, 64
        %s238 = scalar_lea.vmem [#allocation5], %s237
        %p239 = pneg %p82
        %p240 = pneg %p79
        %p241 = scmp.lt.s32.totalorder %s28, 2
        %s242 = scalar_select %p241, %s28, 2
        %s243 = scalar_lea.vmem %s2, %s242
        %p244 = pneg %p108
        %p245 = pneg %p105
        %p246 = pneg %p136
        %p247 = pneg %p133
        %s248 = sand.u32 %s123, 1
        %s249 = scalar_lea.sflag [#allocation4], %s248
        %s250 = sand.u32 %s123, 1
        %s251 = smul.addr %s250, 256
        %s252 = scalar_lea.vmem [#allocation7], %s251
        %s253 = smul.u32 64, %s27
        %p254 = scmp.lt.s32.totalorder %s28, 2
        %s255 = scalar_select %p254, %s28, 2
        %s256 = scalar_lea.vmem %s2, %s255
        %s257 = smul.u32 64, %s27
        %v259 = vld [vmem:[%s213] sm:$0xf]
        %v260 = vld [vmem:[%s213 + $0x4] sm:$0xf]
        %v261 = vld [vmem:[%s213 + $0x8] sm:$0xf]
        %v262 = vld [vmem:[%s213 + $0xc] sm:$0xf]
        %v263 = vld [vmem:[%s213 + $0x10] sm:$0xf]
        %v264 = vld [vmem:[%s213 + $0x14] sm:$0xf]
        %v265 = vld [vmem:[%s213 + $0x18] sm:$0xf]
        %v266 = vld [vmem:[%s213 + $0x1c] sm:$0xf]
        %v267 = vld [vmem:[%s213 + $0x20] sm:$0xf]
        %v268 = vld [vmem:[%s213 + $0x24] sm:$0xf]
        %v269 = vld [vmem:[%s213 + $0x28] sm:$0xf]
        %v270 = vld [vmem:[%s213 + $0x2c] sm:$0xf]
        %v271 = vld [vmem:[%s213 + $0x30] sm:$0xf]
        %v272 = vld [vmem:[%s213 + $0x34] sm:$0xf]
        %v273 = vld [vmem:[%s213 + $0x38] sm:$0xf]
        %v274 = vld [vmem:[%s213 + $0x3c] sm:$0xf]
        %v275 = vld [vmem:[%s213 + $0x40] sm:$0xf]
        %v276 = vld [vmem:[%s213 + $0x44] sm:$0xf]
        %v277 = vld [vmem:[%s213 + $0x48] sm:$0xf]
        %v278 = vld [vmem:[%s213 + $0x4c] sm:$0xf]
        %v279 = vld [vmem:[%s213 + $0x50] sm:$0xf]
        %v280 = vld [vmem:[%s213 + $0x54] sm:$0xf]
        %v281 = vld [vmem:[%s213 + $0x58] sm:$0xf]
        %v282 = vld [vmem:[%s213 + $0x5c] sm:$0xf]
        %v283 = vld [vmem:[%s213 + $0x60] sm:$0xf]
        %v284 = vld [vmem:[%s213 + $0x64] sm:$0xf]
        %v285 = vld [vmem:[%s213 + $0x68] sm:$0xf]
        %v286 = vld [vmem:[%s213 + $0x6c] sm:$0xf]
        %v287 = vld [vmem:[%s213 + $0x70] sm:$0xf]
        %v288 = vld [vmem:[%s213 + $0x74] sm:$0xf]
        %v289 = vld [vmem:[%s213 + $0x78] sm:$0xf]
        %v290 = vld [vmem:[%s213 + $0x7c] sm:$0xf]
        %v291 = vld [vmem:[%s213 + $0x80] sm:$0xf]
        %v292 = vld [vmem:[%s213 + $0x84] sm:$0xf]
        %v293 = vld [vmem:[%s213 + $0x88] sm:$0xf]
        %v294 = vld [vmem:[%s213 + $0x8c] sm:$0xf]
        %v295 = vld [vmem:[%s213 + $0x90] sm:$0xf]
        %v296 = vld [vmem:[%s213 + $0x94] sm:$0xf]
        %v297 = vld [vmem:[%s213 + $0x98] sm:$0xf]
        %v298 = vld [vmem:[%s213 + $0x9c] sm:$0xf]
        %v299 = vld [vmem:[%s213 + $0xa0] sm:$0xf]
        %v300 = vld [vmem:[%s213 + $0xa4] sm:$0xf]
        %v301 = vld [vmem:[%s213 + $0xa8] sm:$0xf]
        %v302 = vld [vmem:[%s213 + $0xac] sm:$0xf]
        %v303 = vld [vmem:[%s213 + $0xb0] sm:$0xf]
        %v304 = vld [vmem:[%s213 + $0xb4] sm:$0xf]
        %v305 = vld [vmem:[%s213 + $0xb8] sm:$0xf]
        %v306 = vld [vmem:[%s213 + $0xbc] sm:$0xf]
        %v307 = vld [vmem:[%s213 + $0xc0] sm:$0xf]
        %v308 = vld [vmem:[%s213 + $0xc4] sm:$0xf]
        %v309 = vld [vmem:[%s213 + $0xc8] sm:$0xf]
        %v310 = vld [vmem:[%s213 + $0xcc] sm:$0xf]
        %v311 = vld [vmem:[%s213 + $0xd0] sm:$0xf]
        %v312 = vld [vmem:[%s213 + $0xd4] sm:$0xf]
        %v313 = vld [vmem:[%s213 + $0xd8] sm:$0xf]
        %v314 = vld [vmem:[%s213 + $0xdc] sm:$0xf]
        %v315 = vld [vmem:[%s213 + $0xe0] sm:$0xf]
        %v316 = vld [vmem:[%s213 + $0xe4] sm:$0xf]
        %v317 = vld [vmem:[%s213 + $0xe8] sm:$0xf]
        %v318 = vld [vmem:[%s213 + $0xec] sm:$0xf]
        %v319 = vld [vmem:[%s213 + $0xf0] sm:$0xf]
        %v320 = vld [vmem:[%s213 + $0xf4] sm:$0xf]
        %v321 = vld [vmem:[%s213 + $0xf8] sm:$0xf]
        %v322 = vld [vmem:[%s213 + $0xfc] sm:$0xf]
        %v323 = vld [vmem:[%s222] sm:$0xf]
        %v324 = vld [vmem:[%s222 + $0x4] sm:$0xf]
        %v325 = vld [vmem:[%s222 + $0x8] sm:$0xf]
        %v326 = vld [vmem:[%s222 + $0xc] sm:$0xf]
        %v327 = vld [vmem:[%s222 + $0x10] sm:$0xf]
        %v328 = vld [vmem:[%s222 + $0x14] sm:$0xf]
        %v329 = vld [vmem:[%s222 + $0x18] sm:$0xf]
        %v330 = vld [vmem:[%s222 + $0x1c] sm:$0xf]
        %v331 = vld [vmem:[%s222 + $0x20] sm:$0xf]
        %v332 = vld [vmem:[%s222 + $0x24] sm:$0xf]
        %v333 = vld [vmem:[%s222 + $0x28] sm:$0xf]
        %v334 = vld [vmem:[%s222 + $0x2c] sm:$0xf]
        %v335 = vld [vmem:[%s222 + $0x30] sm:$0xf]
        %v336 = vld [vmem:[%s222 + $0x34] sm:$0xf]
        %v337 = vld [vmem:[%s222 + $0x38] sm:$0xf]
        %v338 = vld [vmem:[%s222 + $0x3c] sm:$0xf]
        %v339 = vld [vmem:[%s256] sm:$0x1]
        %v341 = vlaneseq
        %v342 = vshrl.u32 %v341, 7
        %v343 = vsub.s32 0, %v342
        %v344 = vrot.slane %v339, %v343
        %v410 = vunpack.c.l.b16 %v259
        %v411 = vunpack.c.l.b16 %v260
        %v412 = vunpack.c.l.b16 %v261
        %v413 = vunpack.c.l.b16 %v262
        %v414 = vunpack.c.l.b16 %v263
        %v415 = vunpack.c.l.b16 %v264
        %v416 = vunpack.c.l.b16 %v265
        %v417 = vunpack.c.l.b16 %v266
        %v418 = vunpack.c.l.b16 %v267
        %v419 = vunpack.c.l.b16 %v268
        %v420 = vunpack.c.l.b16 %v269
        %v421 = vunpack.c.l.b16 %v270
        %v422 = vunpack.c.l.b16 %v271
        %v423 = vunpack.c.l.b16 %v272
        %v424 = vunpack.c.l.b16 %v273
        %v425 = vunpack.c.l.b16 %v274
        %v426 = vunpack.c.l.b16 %v275
        %v427 = vunpack.c.l.b16 %v276
        %v428 = vunpack.c.l.b16 %v277
        %v429 = vunpack.c.l.b16 %v278
        %v430 = vunpack.c.l.b16 %v279
        %v431 = vunpack.c.l.b16 %v280
        %v432 = vunpack.c.l.b16 %v281
        %v433 = vunpack.c.l.b16 %v282
        %v434 = vunpack.c.l.b16 %v283
        %v435 = vunpack.c.l.b16 %v284
        %v436 = vunpack.c.l.b16 %v285
        %v437 = vunpack.c.l.b16 %v286
        %v438 = vunpack.c.l.b16 %v287
        %v439 = vunpack.c.l.b16 %v288
        %v440 = vunpack.c.l.b16 %v289
        %v441 = vunpack.c.l.b16 %v290
        %v442 = vunpack.c.l.b16 %v291
        %v443 = vunpack.c.l.b16 %v292
        %v444 = vunpack.c.l.b16 %v293
        %v445 = vunpack.c.l.b16 %v294
        %v446 = vunpack.c.l.b16 %v295
        %v447 = vunpack.c.l.b16 %v296
        %v448 = vunpack.c.l.b16 %v297
        %v449 = vunpack.c.l.b16 %v298
        %v450 = vunpack.c.l.b16 %v299
        %v451 = vunpack.c.l.b16 %v300
        %v452 = vunpack.c.l.b16 %v301
        %v453 = vunpack.c.l.b16 %v302
        %v454 = vunpack.c.l.b16 %v303
        %v455 = vunpack.c.l.b16 %v304
        %v456 = vunpack.c.l.b16 %v305
        %v457 = vunpack.c.l.b16 %v306
        %v458 = vunpack.c.l.b16 %v307
        %v459 = vunpack.c.l.b16 %v308
        %v460 = vunpack.c.l.b16 %v309
        %v461 = vunpack.c.l.b16 %v310
        %v462 = vunpack.c.l.b16 %v311
        %v463 = vunpack.c.l.b16 %v312
        %v464 = vunpack.c.l.b16 %v313
        %v465 = vunpack.c.l.b16 %v314
        %v466 = vunpack.c.l.b16 %v315
        %v467 = vunpack.c.l.b16 %v316
        %v468 = vunpack.c.l.b16 %v317
        %v469 = vunpack.c.l.b16 %v318
        %v470 = vunpack.c.l.b16 %v319
        %v471 = vunpack.c.l.b16 %v320
        %v472 = vunpack.c.l.b16 %v321
        %v473 = vunpack.c.l.b16 %v322
        %v474 = vpack.c.b16 %v411, %v410
        %v475 = vpack.c.b16 %v413, %v412
        %v476 = vpack.c.b16 %v415, %v414
        %v477 = vpack.c.b16 %v417, %v416
        %v478 = vpack.c.b16 %v419, %v418
        %v479 = vpack.c.b16 %v421, %v420
        %v480 = vpack.c.b16 %v423, %v422
        %v481 = vpack.c.b16 %v425, %v424
        %v482 = vpack.c.b16 %v427, %v426
        %v483 = vpack.c.b16 %v429, %v428
        %v484 = vpack.c.b16 %v431, %v430
        %v485 = vpack.c.b16 %v433, %v432
        %v486 = vpack.c.b16 %v435, %v434
        %v487 = vpack.c.b16 %v437, %v436
        %v488 = vpack.c.b16 %v439, %v438
        %v489 = vpack.c.b16 %v441, %v440
        %v490 = vpack.c.b16 %v443, %v442
        %v491 = vpack.c.b16 %v445, %v444
        %v492 = vpack.c.b16 %v447, %v446
        %v493 = vpack.c.b16 %v449, %v448
        %v494 = vpack.c.b16 %v451, %v450
        %v495 = vpack.c.b16 %v453, %v452
        %v496 = vpack.c.b16 %v455, %v454
        %v497 = vpack.c.b16 %v457, %v456
        %v498 = vpack.c.b16 %v459, %v458
        %v499 = vpack.c.b16 %v461, %v460
        %v500 = vpack.c.b16 %v463, %v462
        %v501 = vpack.c.b16 %v465, %v464
        %v502 = vpack.c.b16 %v467, %v466
        %v503 = vpack.c.b16 %v469, %v468
        %v504 = vpack.c.b16 %v471, %v470
        %v505 = vpack.c.b16 %v473, %v472
        %v554 = vunpack.c.l.b16 %v323
        %v555 = vunpack.c.l.b16 %v324
        %v556 = vunpack.c.l.b16 %v325
        %v557 = vunpack.c.l.b16 %v326
        %v558 = vunpack.c.l.b16 %v327
        %v559 = vunpack.c.l.b16 %v328
        %v560 = vunpack.c.l.b16 %v329
        %v561 = vunpack.c.l.b16 %v330
        %v562 = vunpack.c.l.b16 %v331
        %v563 = vunpack.c.l.b16 %v332
        %v564 = vunpack.c.l.b16 %v333
        %v565 = vunpack.c.l.b16 %v334
        %v566 = vunpack.c.l.b16 %v335
        %v567 = vunpack.c.l.b16 %v336
        %v568 = vunpack.c.l.b16 %v337
        %v569 = vunpack.c.l.b16 %v338
        %v570 = vpack.c.b16 %v555, %v554
        %v571 = vpack.c.b16 %v557, %v556
        %v572 = vpack.c.b16 %v559, %v558
        %v573 = vpack.c.b16 %v561, %v560
        %v574 = vpack.c.b16 %v563, %v562
        %v575 = vpack.c.b16 %v565, %v564
        %v576 = vpack.c.b16 %v567, %v566
        %v577 = vpack.c.b16 %v569, %v568
        %586 = vmatprep.subr.bf16.mxu0 0
        %587 = vmatpush1.bf16.msra.mxu0 %v570
        %588 = vmatprep.subr.bf16.mxu0 0
        %589 = vmatpush1.bf16.msra.mxu0 %v571
        %590 = vmatprep.subr.bf16.mxu0 0
        %591 = vmatpush1.bf16.msra.mxu0 %v572
        %592 = vmatprep.subr.bf16.mxu0 0
        %593 = vmatpush1.bf16.msra.mxu0 %v573
        %594 = vmatprep.subr.bf16.mxu0 0
        %595 = vmatpush1.bf16.msra.mxu0 %v574
        %596 = vmatprep.subr.bf16.mxu0 0
        %597 = vmatpush1.bf16.msra.mxu0 %v575
        %598 = vmatprep.subr.bf16.mxu0 0
        %599 = vmatpush1.bf16.msra.mxu0 %v576
        %600 = vmatprep.subr.bf16.mxu0 0
        %601 = vmatpush1.bf16.msra.mxu0 %v577
        %602 = vmatprep.subr.bf16.mxu0 0
        %603 = vmatpush1.bf16.msra.mxu0 0
        %604 = vmatprep.subr.bf16.mxu0 0
        %605 = vmatpush1.bf16.msra.mxu0 0
        %606 = vmatprep.subr.bf16.mxu0 0
        %607 = vmatpush1.bf16.msra.mxu0 0
        %608 = vmatprep.subr.bf16.mxu0 0
        %609 = vmatpush1.bf16.msra.mxu0 0
        %610 = vmatprep.subr.bf16.mxu0 0
        %611 = vmatpush1.bf16.msra.mxu0 0
        %612 = vmatprep.subr.bf16.mxu0 0
        %613 = vmatpush1.bf16.msra.mxu0 0
        %614 = vmatprep.subr.bf16.mxu0 0
        %615 = vmatpush1.bf16.msra.mxu0 0
        %616 = vmatprep.subr.bf16.mxu0 0
        %617 = vmatpush1.bf16.msra.mxu0 0
        %618 = vmatprep.mubr.bf16.mxu0 0
        %619 = vmatmul.mubr.bf16.gmra.mrb[0].mxu0 %v474
        %v620 = vpop.f32.mrb[0].mxu0
        %v621 = vadd.f32 %v344, %v620
        %v622 = vpop.f32.mrb[0].mxu0
        %v623 = vpop.f32.mrb[0].mxu0
        %v624 = vadd.f32 %v344, %v623
        %v625 = vpop.f32.mrb[0].mxu0
        %626 = vmatprep.mubr.bf16.mxu0 0
        %627 = vmatmul.mubr.bf16.gmra.mrb[0].mxu0 %v475
        %v628 = vpop.f32.mrb[0].mxu0
        %v629 = vadd.f32 %v344, %v628
        %v630 = vpop.f32.mrb[0].mxu0
        %v631 = vpop.f32.mrb[0].mxu0
        %v632 = vadd.f32 %v344, %v631
        %v633 = vpop.f32.mrb[0].mxu0
        %634 = vmatprep.mubr.bf16.mxu0 0
        %635 = vmatmul.mubr.bf16.gmra.mrb[0].mxu0 %v476
        %v636 = vpop.f32.mrb[0].mxu0
        %v637 = vadd.f32 %v344, %v636
        %v638 = vpop.f32.mrb[0].mxu0
        %v639 = vpop.f32.mrb[0].mxu0
        %v640 = vadd.f32 %v344, %v639
        %v641 = vpop.f32.mrb[0].mxu0
        %642 = vmatprep.mubr.bf16.mxu0 0
        %643 = vmatmul.mubr.bf16.gmra.mrb[0].mxu0 %v477
        %v644 = vpop.f32.mrb[0].mxu0
        %v645 = vadd.f32 %v344, %v644
        %v646 = vpop.f32.mrb[0].mxu0
        %v647 = vpop.f32.mrb[0].mxu0
        %v648 = vadd.f32 %v344, %v647
        %v649 = vpop.f32.mrb[0].mxu0
        %650 = vmatprep.mubr.bf16.mxu0 0
        %651 = vmatmul.mubr.bf16.gmra.mrb[0].mxu0 %v478
        %v652 = vpop.f32.mrb[0].mxu0
        %v653 = vadd.f32 %v344, %v652
        %v654 = vpop.f32.mrb[0].mxu0
        %v655 = vpop.f32.mrb[0].mxu0
        %v656 = vadd.f32 %v344, %v655
        %v657 = vpop.f32.mrb[0].mxu0
        %658 = vmatprep.mubr.bf16.mxu0 0
        %659 = vmatmul.mubr.bf16.gmra.mrb[0].mxu0 %v479
        %v660 = vpop.f32.mrb[0].mxu0
        %v661 = vadd.f32 %v344, %v660
        %v662 = vpop.f32.mrb[0].mxu0
        %v663 = vpop.f32.mrb[0].mxu0
        %v664 = vadd.f32 %v344, %v663
        %v665 = vpop.f32.mrb[0].mxu0
        %666 = vmatprep.mubr.bf16.mxu0 0
        %667 = vmatmul.mubr.bf16.gmra.mrb[0].mxu0 %v480
        %v668 = vpop.f32.mrb[0].mxu0
        %v669 = vadd.f32 %v344, %v668
        %v670 = vpop.f32.mrb[0].mxu0
        %v671 = vpop.f32.mrb[0].mxu0
        %v672 = vadd.f32 %v344, %v671
        %v673 = vpop.f32.mrb[0].mxu0
        %674 = vmatprep.mubr.bf16.mxu0 0
        %675 = vmatmul.mubr.bf16.gmra.mrb[0].mxu0 %v481
        %v676 = vpop.f32.mrb[0].mxu0
        %v677 = vadd.f32 %v344, %v676
        %v678 = vpop.f32.mrb[0].mxu0
        %v679 = vpop.f32.mrb[0].mxu0
        %v680 = vadd.f32 %v344, %v679
        %v681 = vpop.f32.mrb[0].mxu0
        %682 = vmatprep.mubr.bf16.mxu0 0
        %683 = vmatmul.mubr.bf16.gmra.mrb[0].mxu0 %v482
        %v684 = vpop.f32.mrb[0].mxu0
        %v685 = vadd.f32 %v344, %v684
        %v686 = vpop.f32.mrb[0].mxu0
        %v687 = vpop.f32.mrb[0].mxu0
        %v688 = vadd.f32 %v344, %v687
        %v689 = vpop.f32.mrb[0].mxu0
        %690 = vmatprep.mubr.bf16.mxu0 0
        %691 = vmatmul.mubr.bf16.gmra.mrb[0].mxu0 %v483
        %v692 = vpop.f32.mrb[0].mxu0
        %v693 = vadd.f32 %v344, %v692
        %v694 = vpop.f32.mrb[0].mxu0
        %v695 = vpop.f32.mrb[0].mxu0
        %v696 = vadd.f32 %v344, %v695
        %v697 = vpop.f32.mrb[0].mxu0
        %698 = vmatprep.mubr.bf16.mxu0 0
        %699 = vmatmul.mubr.bf16.gmra.mrb[0].mxu0 %v484
        %v700 = vpop.f32.mrb[0].mxu0
        %v701 = vadd.f32 %v344, %v700
        %v702 = vpop.f32.mrb[0].mxu0
        %v703 = vpop.f32.mrb[0].mxu0
        %v704 = vadd.f32 %v344, %v703
        %v705 = vpop.f32.mrb[0].mxu0
        %706 = vmatprep.mubr.bf16.mxu0 0
        %707 = vmatmul.mubr.bf16.gmra.mrb[0].mxu0 %v485
        %v708 = vpop.f32.mrb[0].mxu0
        %v709 = vadd.f32 %v344, %v708
        %v710 = vpop.f32.mrb[0].mxu0
        %v711 = vpop.f32.mrb[0].mxu0
        %v712 = vadd.f32 %v344, %v711
        %v713 = vpop.f32.mrb[0].mxu0
        %714 = vmatprep.mubr.bf16.mxu0 0
        %715 = vmatmul.mubr.bf16.gmra.mrb[0].mxu0 %v486
        %v716 = vpop.f32.mrb[0].mxu0
        %v717 = vadd.f32 %v344, %v716
        %v718 = vpop.f32.mrb[0].mxu0
        %v719 = vpop.f32.mrb[0].mxu0
        %v720 = vadd.f32 %v344, %v719
        %v721 = vpop.f32.mrb[0].mxu0
        %722 = vmatprep.mubr.bf16.mxu0 0
        %723 = vmatmul.mubr.bf16.gmra.mrb[0].mxu0 %v487
        %v724 = vpop.f32.mrb[0].mxu0
        %v725 = vadd.f32 %v344, %v724
        %v726 = vpop.f32.mrb[0].mxu0
        %v727 = vpop.f32.mrb[0].mxu0
        %v728 = vadd.f32 %v344, %v727
        %v729 = vpop.f32.mrb[0].mxu0
        %730 = vmatprep.mubr.bf16.mxu0 0
        %731 = vmatmul.mubr.bf16.gmra.mrb[0].mxu0 %v488
        %v732 = vpop.f32.mrb[0].mxu0
        %v733 = vadd.f32 %v344, %v732
        %v734 = vpop.f32.mrb[0].mxu0
        %v735 = vpop.f32.mrb[0].mxu0
        %v736 = vadd.f32 %v344, %v735
        %v737 = vpop.f32.mrb[0].mxu0
        %738 = vmatprep.mubr.bf16.mxu0 0
        %739 = vmatmul.mubr.bf16.gmra.mrb[0].mxu0 %v489
        %v740 = vpop.f32.mrb[0].mxu0
        %v741 = vadd.f32 %v344, %v740
        %v742 = vpop.f32.mrb[0].mxu0
        %v743 = vpop.f32.mrb[0].mxu0
        %v744 = vadd.f32 %v344, %v743
        %v745 = vpop.f32.mrb[0].mxu0
        %746 = vmatprep.mubr.bf16.mxu0 0
        %747 = vmatmul.mubr.bf16.gmra.mrb[0].mxu0 %v490
        %v748 = vpop.f32.mrb[0].mxu0
        %v749 = vadd.f32 %v344, %v748
        %v750 = vpop.f32.mrb[0].mxu0
        %v751 = vpop.f32.mrb[0].mxu0
        %v752 = vadd.f32 %v344, %v751
        %v753 = vpop.f32.mrb[0].mxu0
        %754 = vmatprep.mubr.bf16.mxu0 0
        %755 = vmatmul.mubr.bf16.gmra.mrb[0].mxu0 %v491
        %v756 = vpop.f32.mrb[0].mxu0
        %v757 = vadd.f32 %v344, %v756
        %v758 = vpop.f32.mrb[0].mxu0
        %v759 = vpop.f32.mrb[0].mxu0
        %v760 = vadd.f32 %v344, %v759
        %v761 = vpop.f32.mrb[0].mxu0
        %762 = vmatprep.mubr.bf16.mxu0 0
        %763 = vmatmul.mubr.bf16.gmra.mrb[0].mxu0 %v492
        %v764 = vpop.f32.mrb[0].mxu0
        %v765 = vadd.f32 %v344, %v764
        %v766 = vpop.f32.mrb[0].mxu0
        %v767 = vpop.f32.mrb[0].mxu0
        %v768 = vadd.f32 %v344, %v767
        %v769 = vpop.f32.mrb[0].mxu0
        %770 = vmatprep.mubr.bf16.mxu0 0
        %771 = vmatmul.mubr.bf16.gmra.mrb[0].mxu0 %v493
        %v772 = vpop.f32.mrb[0].mxu0
        %v773 = vadd.f32 %v344, %v772
        %v774 = vpop.f32.mrb[0].mxu0
        %v775 = vpop.f32.mrb[0].mxu0
        %v776 = vadd.f32 %v344, %v775
        %v777 = vpop.f32.mrb[0].mxu0
        %778 = vmatprep.mubr.bf16.mxu0 0
        %779 = vmatmul.mubr.bf16.gmra.mrb[0].mxu0 %v494
        %v780 = vpop.f32.mrb[0].mxu0
        %v781 = vadd.f32 %v344, %v780
        %v782 = vpop.f32.mrb[0].mxu0
        %v783 = vpop.f32.mrb[0].mxu0
        %v784 = vadd.f32 %v344, %v783
        %v785 = vpop.f32.mrb[0].mxu0
        %786 = vmatprep.mubr.bf16.mxu0 0
        %787 = vmatmul.mubr.bf16.gmra.mrb[0].mxu0 %v495
        %v788 = vpop.f32.mrb[0].mxu0
        %v789 = vadd.f32 %v344, %v788
        %v790 = vpop.f32.mrb[0].mxu0
        %v791 = vpop.f32.mrb[0].mxu0
        %v792 = vadd.f32 %v344, %v791
        %v793 = vpop.f32.mrb[0].mxu0
        %794 = vmatprep.mubr.bf16.mxu0 0
        %795 = vmatmul.mubr.bf16.gmra.mrb[0].mxu0 %v496
        %v796 = vpop.f32.mrb[0].mxu0
        %v797 = vadd.f32 %v344, %v796
        %v798 = vpop.f32.mrb[0].mxu0
        %v799 = vpop.f32.mrb[0].mxu0
        %v800 = vadd.f32 %v344, %v799
        %v801 = vpop.f32.mrb[0].mxu0
        %802 = vmatprep.mubr.bf16.mxu0 0
        %803 = vmatmul.mubr.bf16.gmra.mrb[0].mxu0 %v497
        %v804 = vpop.f32.mrb[0].mxu0
        %v805 = vadd.f32 %v344, %v804
        %v806 = vpop.f32.mrb[0].mxu0
        %v807 = vpop.f32.mrb[0].mxu0
        %v808 = vadd.f32 %v344, %v807
        %v809 = vpop.f32.mrb[0].mxu0
        %810 = vmatprep.mubr.bf16.mxu0 0
        %811 = vmatmul.mubr.bf16.gmra.mrb[0].mxu0 %v498
        %v812 = vpop.f32.mrb[0].mxu0
        %v813 = vadd.f32 %v344, %v812
        %v814 = vpop.f32.mrb[0].mxu0
        %v815 = vpop.f32.mrb[0].mxu0
        %v816 = vadd.f32 %v344, %v815
        %v817 = vpop.f32.mrb[0].mxu0
        %818 = vmatprep.mubr.bf16.mxu0 0
        %819 = vmatmul.mubr.bf16.gmra.mrb[0].mxu0 %v499
        %v820 = vpop.f32.mrb[0].mxu0
        %v821 = vadd.f32 %v344, %v820
        %v822 = vpop.f32.mrb[0].mxu0
        %v823 = vpop.f32.mrb[0].mxu0
        %v824 = vadd.f32 %v344, %v823
        %v825 = vpop.f32.mrb[0].mxu0
        %826 = vmatprep.mubr.bf16.mxu0 0
        %827 = vmatmul.mubr.bf16.gmra.mrb[0].mxu0 %v500
        %v828 = vpop.f32.mrb[0].mxu0
        %v829 = vadd.f32 %v344, %v828
        %v830 = vpop.f32.mrb[0].mxu0
        %v831 = vpop.f32.mrb[0].mxu0
        %v832 = vadd.f32 %v344, %v831
        %v833 = vpop.f32.mrb[0].mxu0
        %834 = vmatprep.mubr.bf16.mxu0 0
        %835 = vmatmul.mubr.bf16.gmra.mrb[0].mxu0 %v501
        %v836 = vpop.f32.mrb[0].mxu0
        %v837 = vadd.f32 %v344, %v836
        %v838 = vpop.f32.mrb[0].mxu0
        %v839 = vpop.f32.mrb[0].mxu0
        %v840 = vadd.f32 %v344, %v839
        %v841 = vpop.f32.mrb[0].mxu0
        %842 = vmatprep.mubr.bf16.mxu0 0
        %843 = vmatmul.mubr.bf16.gmra.mrb[0].mxu0 %v502
        %v844 = vpop.f32.mrb[0].mxu0
        %v845 = vadd.f32 %v344, %v844
        %v846 = vpop.f32.mrb[0].mxu0
        %v847 = vpop.f32.mrb[0].mxu0
        %v848 = vadd.f32 %v344, %v847
        %v849 = vpop.f32.mrb[0].mxu0
        %850 = vmatprep.mubr.bf16.mxu0 0
        %851 = vmatmul.mubr.bf16.gmra.mrb[0].mxu0 %v503
        %v852 = vpop.f32.mrb[0].mxu0
        %v853 = vadd.f32 %v344, %v852
        %v854 = vpop.f32.mrb[0].mxu0
        %v855 = vpop.f32.mrb[0].mxu0
        %v856 = vadd.f32 %v344, %v855
        %v857 = vpop.f32.mrb[0].mxu0
        %858 = vmatprep.mubr.bf16.mxu0 0
        %859 = vmatmul.mubr.bf16.gmra.mrb[0].mxu0 %v504
        %v860 = vpop.f32.mrb[0].mxu0
        %v861 = vadd.f32 %v344, %v860
        %v862 = vpop.f32.mrb[0].mxu0
        %v863 = vpop.f32.mrb[0].mxu0
        %v864 = vadd.f32 %v344, %v863
        %v865 = vpop.f32.mrb[0].mxu0
        %866 = vmatprep.mubr.bf16.mxu0 0
        %867 = vmatmul.mubr.bf16.gmra.mrb[0].mxu0 %v505
        %v868 = vpop.f32.mrb[0].mxu0
        %v869 = vadd.f32 %v344, %v868
        %v870 = vpop.f32.mrb[0].mxu0
        %v871 = vpop.f32.mrb[0].mxu0
        %v872 = vadd.f32 %v344, %v871
        %v873 = vpop.f32.mrb[0].mxu0
        %874 = vdwg.mxu0
        %v875 = vpack.c.bf16 %v624, %v621
        %v876 = vpack.c.bf16 %v632, %v629
        %v877 = vpack.c.bf16 %v640, %v637
        %v878 = vpack.c.bf16 %v648, %v645
        %v879 = vpack.c.bf16 %v656, %v653
        %v880 = vpack.c.bf16 %v664, %v661
        %v881 = vpack.c.bf16 %v672, %v669
        %v882 = vpack.c.bf16 %v680, %v677
        %v883 = vpack.c.bf16 %v688, %v685
        %v884 = vpack.c.bf16 %v696, %v693
        %v885 = vpack.c.bf16 %v704, %v701
        %v886 = vpack.c.bf16 %v712, %v709
        %v887 = vpack.c.bf16 %v720, %v717
        %v888 = vpack.c.bf16 %v728, %v725
        %v889 = vpack.c.bf16 %v736, %v733
        %v890 = vpack.c.bf16 %v744, %v741
        %v891 = vpack.c.bf16 %v752, %v749
        %v892 = vpack.c.bf16 %v760, %v757
        %v893 = vpack.c.bf16 %v768, %v765
        %v894 = vpack.c.bf16 %v776, %v773
        %v895 = vpack.c.bf16 %v784, %v781
        %v896 = vpack.c.bf16 %v792, %v789
        %v897 = vpack.c.bf16 %v800, %v797
        %v898 = vpack.c.bf16 %v808, %v805
        %v899 = vpack.c.bf16 %v816, %v813
        %v900 = vpack.c.bf16 %v824, %v821
        %v901 = vpack.c.bf16 %v832, %v829
        %v902 = vpack.c.bf16 %v840, %v837
        %v903 = vpack.c.bf16 %v848, %v845
        %v904 = vpack.c.bf16 %v856, %v853
        %v905 = vpack.c.bf16 %v864, %v861
        %v906 = vpack.c.bf16 %v872, %v869
        %v939 = vunpack.c.l.b16 %v875
        %v940 = vunpack.c.h.b16 %v875
        %v941 = vunpack.c.l.b16 %v876
        %v942 = vunpack.c.h.b16 %v876
        %v943 = vunpack.c.l.b16 %v877
        %v944 = vunpack.c.h.b16 %v877
        %v945 = vunpack.c.l.b16 %v878
        %v946 = vunpack.c.h.b16 %v878
        %v947 = vunpack.c.l.b16 %v879
        %v948 = vunpack.c.h.b16 %v879
        %v949 = vunpack.c.l.b16 %v880
        %v950 = vunpack.c.h.b16 %v880
        %v951 = vunpack.c.l.b16 %v881
        %v952 = vunpack.c.h.b16 %v881
        %v953 = vunpack.c.l.b16 %v882
        %v954 = vunpack.c.h.b16 %v882
        %v955 = vunpack.c.l.b16 %v883
        %v956 = vunpack.c.h.b16 %v883
        %v957 = vunpack.c.l.b16 %v884
        %v958 = vunpack.c.h.b16 %v884
        %v959 = vunpack.c.l.b16 %v885
        %v960 = vunpack.c.h.b16 %v885
        %v961 = vunpack.c.l.b16 %v886
        %v962 = vunpack.c.h.b16 %v886
        %v963 = vunpack.c.l.b16 %v887
        %v964 = vunpack.c.h.b16 %v887
        %v965 = vunpack.c.l.b16 %v888
        %v966 = vunpack.c.h.b16 %v888
        %v967 = vunpack.c.l.b16 %v889
        %v968 = vunpack.c.h.b16 %v889
        %v969 = vunpack.c.l.b16 %v890
        %v970 = vunpack.c.h.b16 %v890
        %v971 = vunpack.c.l.b16 %v891
        %v972 = vunpack.c.h.b16 %v891
        %v973 = vunpack.c.l.b16 %v892
        %v974 = vunpack.c.h.b16 %v892
        %v975 = vunpack.c.l.b16 %v893
        %v976 = vunpack.c.h.b16 %v893
        %v977 = vunpack.c.l.b16 %v894
        %v978 = vunpack.c.h.b16 %v894
        %v979 = vunpack.c.l.b16 %v895
        %v980 = vunpack.c.h.b16 %v895
        %v981 = vunpack.c.l.b16 %v896
        %v982 = vunpack.c.h.b16 %v896
        %v983 = vunpack.c.l.b16 %v897
        %v984 = vunpack.c.h.b16 %v897
        %v985 = vunpack.c.l.b16 %v898
        %v986 = vunpack.c.h.b16 %v898
        %v987 = vunpack.c.l.b16 %v899
        %v988 = vunpack.c.h.b16 %v899
        %v989 = vunpack.c.l.b16 %v900
        %v990 = vunpack.c.h.b16 %v900
        %v991 = vunpack.c.l.b16 %v901
        %v992 = vunpack.c.h.b16 %v901
        %v993 = vunpack.c.l.b16 %v902
        %v994 = vunpack.c.h.b16 %v902
        %v995 = vunpack.c.l.b16 %v903
        %v996 = vunpack.c.h.b16 %v903
        %v997 = vunpack.c.l.b16 %v904
        %v998 = vunpack.c.h.b16 %v904
        %v999 = vunpack.c.l.b16 %v905
        %v1000 = vunpack.c.h.b16 %v905
        %v1001 = vunpack.c.l.b16 %v906
        %v1002 = vunpack.c.h.b16 %v906
        %v1003 = vpack.c.b16 %v939, %v939
        %v1004 = vpack.c.b16 %v940, %v940
        %v1005 = vpack.c.b16 %v941, %v941
        %v1006 = vpack.c.b16 %v942, %v942
        %v1007 = vpack.c.b16 %v943, %v943
        %v1008 = vpack.c.b16 %v944, %v944
        %v1009 = vpack.c.b16 %v945, %v945
        %v1010 = vpack.c.b16 %v946, %v946
        %v1011 = vpack.c.b16 %v947, %v947
        %v1012 = vpack.c.b16 %v948, %v948
        %v1013 = vpack.c.b16 %v949, %v949
        %v1014 = vpack.c.b16 %v950, %v950
        %v1015 = vpack.c.b16 %v951, %v951
        %v1016 = vpack.c.b16 %v952, %v952
        %v1017 = vpack.c.b16 %v953, %v953
        %v1018 = vpack.c.b16 %v954, %v954
        %v1019 = vpack.c.b16 %v955, %v955
        %v1020 = vpack.c.b16 %v956, %v956
        %v1021 = vpack.c.b16 %v957, %v957
        %v1022 = vpack.c.b16 %v958, %v958
        %v1023 = vpack.c.b16 %v959, %v959
        %v1024 = vpack.c.b16 %v960, %v960
        %v1025 = vpack.c.b16 %v961, %v961
        %v1026 = vpack.c.b16 %v962, %v962
        %v1027 = vpack.c.b16 %v963, %v963
        %v1028 = vpack.c.b16 %v964, %v964
        %v1029 = vpack.c.b16 %v965, %v965
        %v1030 = vpack.c.b16 %v966, %v966
        %v1031 = vpack.c.b16 %v967, %v967
        %v1032 = vpack.c.b16 %v968, %v968
        %v1033 = vpack.c.b16 %v969, %v969
        %v1034 = vpack.c.b16 %v970, %v970
        %v1035 = vpack.c.b16 %v971, %v971
        %v1036 = vpack.c.b16 %v972, %v972
        %v1037 = vpack.c.b16 %v973, %v973
        %v1038 = vpack.c.b16 %v974, %v974
        %v1039 = vpack.c.b16 %v975, %v975
        %v1040 = vpack.c.b16 %v976, %v976
        %v1041 = vpack.c.b16 %v977, %v977
        %v1042 = vpack.c.b16 %v978, %v978
        %v1043 = vpack.c.b16 %v979, %v979
        %v1044 = vpack.c.b16 %v980, %v980
        %v1045 = vpack.c.b16 %v981, %v981
        %v1046 = vpack.c.b16 %v982, %v982
        %v1047 = vpack.c.b16 %v983, %v983
        %v1048 = vpack.c.b16 %v984, %v984
        %v1049 = vpack.c.b16 %v985, %v985
        %v1050 = vpack.c.b16 %v986, %v986
        %v1051 = vpack.c.b16 %v987, %v987
        %v1052 = vpack.c.b16 %v988, %v988
        %v1053 = vpack.c.b16 %v989, %v989
        %v1054 = vpack.c.b16 %v990, %v990
        %v1055 = vpack.c.b16 %v991, %v991
        %v1056 = vpack.c.b16 %v992, %v992
        %v1057 = vpack.c.b16 %v993, %v993
        %v1058 = vpack.c.b16 %v994, %v994
        %v1059 = vpack.c.b16 %v995, %v995
        %v1060 = vpack.c.b16 %v996, %v996
        %v1061 = vpack.c.b16 %v997, %v997
        %v1062 = vpack.c.b16 %v998, %v998
        %v1063 = vpack.c.b16 %v999, %v999
        %v1064 = vpack.c.b16 %v1000, %v1000
        %v1065 = vpack.c.b16 %v1001, %v1001
        %v1066 = vpack.c.b16 %v1002, %v1002
        %1131 = vst [vmem:[%s252] sm:$0xf] %v1003
        %1132 = vst [vmem:[%s252 + $0x4] sm:$0xf] %v1004
        %1133 = vst [vmem:[%s252 + $0x8] sm:$0xf] %v1005
        %1134 = vst [vmem:[%s252 + $0xc] sm:$0xf] %v1006
        %1135 = vst [vmem:[%s252 + $0x10] sm:$0xf] %v1007
        %1136 = vst [vmem:[%s252 + $0x14] sm:$0xf] %v1008
        %1137 = vst [vmem:[%s252 + $0x18] sm:$0xf] %v1009
        %1138 = vst [vmem:[%s252 + $0x1c] sm:$0xf] %v1010
        %1139 = vst [vmem:[%s252 + $0x20] sm:$0xf] %v1011
        %1140 = vst [vmem:[%s252 + $0x24] sm:$0xf] %v1012
        %1141 = vst [vmem:[%s252 + $0x28] sm:$0xf] %v1013
        %1142 = vst [vmem:[%s252 + $0x2c] sm:$0xf] %v1014
        %1143 = vst [vmem:[%s252 + $0x30] sm:$0xf] %v1015
        %1144 = vst [vmem:[%s252 + $0x34] sm:$0xf] %v1016
        %1145 = vst [vmem:[%s252 + $0x38] sm:$0xf] %v1017
        %1146 = vst [vmem:[%s252 + $0x3c] sm:$0xf] %v1018
        %1147 = vst [vmem:[%s252 + $0x40] sm:$0xf] %v1019
        %1148 = vst [vmem:[%s252 + $0x44] sm:$0xf] %v1020
        %1149 = vst [vmem:[%s252 + $0x48] sm:$0xf] %v1021
        %1150 = vst [vmem:[%s252 + $0x4c] sm:$0xf] %v1022
        %1151 = vst [vmem:[%s252 + $0x50] sm:$0xf] %v1023
        %1152 = vst [vmem:[%s252 + $0x54] sm:$0xf] %v1024
        %1153 = vst [vmem:[%s252 + $0x58] sm:$0xf] %v1025
        %1154 = vst [vmem:[%s252 + $0x5c] sm:$0xf] %v1026
        %1155 = vst [vmem:[%s252 + $0x60] sm:$0xf] %v1027
        %1156 = vst [vmem:[%s252 + $0x64] sm:$0xf] %v1028
        %1157 = vst [vmem:[%s252 + $0x68] sm:$0xf] %v1029
        %1158 = vst [vmem:[%s252 + $0x6c] sm:$0xf] %v1030
        %1159 = vst [vmem:[%s252 + $0x70] sm:$0xf] %v1031
        %1160 = vst [vmem:[%s252 + $0x74] sm:$0xf] %v1032
        %1161 = vst [vmem:[%s252 + $0x78] sm:$0xf] %v1033
        %1162 = vst [vmem:[%s252 + $0x7c] sm:$0xf] %v1034
        %1163 = vst [vmem:[%s252 + $0x80] sm:$0xf] %v1035
        %1164 = vst [vmem:[%s252 + $0x84] sm:$0xf] %v1036
        %1165 = vst [vmem:[%s252 + $0x88] sm:$0xf] %v1037
        %1166 = vst [vmem:[%s252 + $0x8c] sm:$0xf] %v1038
        %1167 = vst [vmem:[%s252 + $0x90] sm:$0xf] %v1039
        %1168 = vst [vmem:[%s252 + $0x94] sm:$0xf] %v1040
        %1169 = vst [vmem:[%s252 + $0x98] sm:$0xf] %v1041
        %1170 = vst [vmem:[%s252 + $0x9c] sm:$0xf] %v1042
        %1171 = vst [vmem:[%s252 + $0xa0] sm:$0xf] %v1043
        %1172 = vst [vmem:[%s252 + $0xa4] sm:$0xf] %v1044
        %1173 = vst [vmem:[%s252 + $0xa8] sm:$0xf] %v1045
        %1174 = vst [vmem:[%s252 + $0xac] sm:$0xf] %v1046
        %1175 = vst [vmem:[%s252 + $0xb0] sm:$0xf] %v1047
        %1176 = vst [vmem:[%s252 + $0xb4] sm:$0xf] %v1048
        %1177 = vst [vmem:[%s252 + $0xb8] sm:$0xf] %v1049
        %1178 = vst [vmem:[%s252 + $0xbc] sm:$0xf] %v1050
        %1179 = vst [vmem:[%s252 + $0xc0] sm:$0xf] %v1051
        %1180 = vst [vmem:[%s252 + $0xc4] sm:$0xf] %v1052
        %1181 = vst [vmem:[%s252 + $0xc8] sm:$0xf] %v1053
        %1182 = vst [vmem:[%s252 + $0xcc] sm:$0xf] %v1054
        %1183 = vst [vmem:[%s252 + $0xd0] sm:$0xf] %v1055
        %1184 = vst [vmem:[%s252 + $0xd4] sm:$0xf] %v1056
        %1185 = vst [vmem:[%s252 + $0xd8] sm:$0xf] %v1057
        %1186 = vst [vmem:[%s252 + $0xdc] sm:$0xf] %v1058
        %1187 = vst [vmem:[%s252 + $0xe0] sm:$0xf] %v1059
        %1188 = vst [vmem:[%s252 + $0xe4] sm:$0xf] %v1060
        %1189 = vst [vmem:[%s252 + $0xe8] sm:$0xf] %v1061
        %1190 = vst [vmem:[%s252 + $0xec] sm:$0xf] %v1062
        %1191 = vst [vmem:[%s252 + $0xf0] sm:$0xf] %v1063
        %1192 = vst [vmem:[%s252 + $0xf4] sm:$0xf] %v1064
        %1193 = vst [vmem:[%s252 + $0xf8] sm:$0xf] %v1065
        %1194 = vst [vmem:[%s252 + $0xfc] sm:$0xf] %v1066
        %s1195 = sand.u32 %s123, 1
        %s1196 = scalar_lea.sflag [#allocation4], %s1195
        %s1197 = sand.u32 %s123, 1
        %s1198 = smul.addr %s1197, 256
        %s1199 = scalar_lea.vmem [#allocation7], %s1198
        // Predicated region
        $region41: #{tpu_custom_call.1} parent=31 // pred_check
          %p1200 = pneg %p133
        $region42: #{tpu_custom_call.1} parent=31 // pred_check_branch
          %1202 = sbr.rel (%p1200) target = $region44
        $region43: #{tpu_custom_call.1} parent=31 // pred_region
          %s1203 = smul.u32 64, %s27
          %s1205 = ssub.s32 4096, 4096
          %1206 = vsyncadd %s1196, %s1205
          %s1207 = smul.addr %s1203, 3
          %s1208 = sadd.s32 %s28, %s1207
          %s1209 = smul.addr %s1208, 64
          %s1210 = scalar_lea.hbm %s3, %s1209
          %s1211 = sshll.u32 %s1199, 4
          %s1212 = int_to_ptr.vmem [resolvable:$true] %s1211
          %1217 = dma.vmem_to_hbm [thread:$0]  %s1212, 4096, %s1210, %s1196, 64, 192, 4
        $region44: #{tpu_custom_call.1} parent=31 // pred_fallthru
          _
      $region32: #{tpu_custom_call.1} parent=5 // pred_fallthru
        _
      %p1218 = scmp.le.s32.totalorder 2, %s18
      // Predicated region
      $region45: #{tpu_custom_call.1} parent=5 // pred_check
        %p1219 = pneg %p1218
      $region46: #{tpu_custom_call.1} parent=5 // pred_check_branch
        %1221 = sbr.rel (%p1219) target = $region48
      $region47: #{tpu_custom_call.1} parent=5 // pred_region
        %s1222 = ssub.s32 %s18, 2
        // Predicated region
        $region49: #{tpu_custom_call.1} parent=47 // pred_check
          %p1223 = pneg %p139
        $region50: #{tpu_custom_call.1} parent=47 // pred_check_branch
          %1225 = sbr.rel (%p1223) target = $region52
        $region51: #{tpu_custom_call.1} parent=47 // pred_region
          %s1226 = sand.u32 %s124, 1
          %s1227 = scalar_lea.sflag [#allocation4], %s1226
          %s1228 = sand.u32 %s124, 1
          %s1229 = smul.addr %s1228, 256
          %s1230 = scalar_lea.vmem [#allocation7], %s1229
          %1231 = dma.done %s1227, 4096
        $region52: #{tpu_custom_call.1} parent=47 // pred_fallthru
          _
      $region48: #{tpu_custom_call.1} parent=5 // pred_fallthru
        _
    $region6: #{tpu_custom_call.1} parent=1 // loop_footer
      %s22 = sadd.s32 1, %s18
    $region7: #{tpu_custom_call.1} parent=1 // loop_footer_branch
      %17 = sbr.rel target = $region3
    $region8: #{tpu_custom_call.1} parent=1 // loop_exit
      _
    %1232 = vsyncpa [#allocation3], 1
    %s1233 = scalar_lea.sflag [#allocation3], 1
    %1234 = vsyncpa %s1233, 1
    %1235 = vsyncpa [#allocation6], 1
    %s1236 = scalar_lea.sflag [#allocation6], 1
    %1237 = vsyncpa %s1236, 1
    %1238 = vsyncpa [#allocation4], 1
    %s1239 = scalar_lea.sflag [#allocation4], 1
    %1240 = vsyncpa %s1239, 1

</llo_original>
